<compile_context>
chip_gen: v6e
topology: v6e:2x2x1
jax: 0.10.0
libtpu: 0.0.40
codegen_flags: <defaults>
</compile_context>

<pallas_src>
import math

import jax
import jax.numpy as jnp
from jax.experimental import pallas as pl
from jax.experimental.pallas import tpu as pltpu

EMB = 4            # embedding_dim
H1, H2 = 80, 40    # hidden_size of fc1
BN_EPS = 1e-9
LANE = 128


def lau_kernel(quT_ref, w1_ref, b1_ref, bn_scale_ref, bn_shift_ref,
               alpha_ref, w2_ref, b2_ref, w3_ref, b3_ref, o_ref):
    qu = quT_ref[...]                     # [2E, TB]  (batch on lanes)
    q = qu[:EMB]                          # [E, TB]
    u = qu[EMB:]                          # [E, TB]

    # DIN interaction features stacked along the sublane axis -> [4E, TB];
    # one K=16 MXU contraction instead of four padded K=4 pushes.  The first
    # 2E rows are the input slab as-is, so only q-u / q*u need placement.
    x = jnp.concatenate([qu, q - u, q * u], axis=0)

    # fc1 layer 1: Linear(16 -> 80), batch stays lane-dense -> [H1, TB].
    h1 = (jnp.dot(w1_ref[...], x, preferred_element_type=jnp.float32)
          + b1_ref[...])

    # Dice(80, dim=2): eval-mode BatchNorm1d folded into per-feature scale/shift.
    x_p = jax.nn.sigmoid(h1 * bn_scale_ref[...] + bn_shift_ref[...])
    a = alpha_ref[...]
    d = h1 * (a + (1.0 - a) * x_p)        # == alpha*(1-x_p)*h1 + x_p*h1
    # TODO(synk): nn.Dropout(p=0.1) is identity in eval mode; omitted.

    # fc1 layer 2: Linear(80 -> 40) -> [H2, TB].
    h2 = (jnp.dot(w2_ref[...], d, preferred_element_type=jnp.float32)
          + b2_ref[...])

    # fc2: Linear(40 -> 1).  N=1 MXU matmul wastes lanes; use a lane-dense
    # VPU multiply + sublane reduce instead.
    out = jnp.sum(w3_ref[...] * h2, axis=0, keepdims=True) + b3_ref[...]   # [1, TB]
    o_ref[...] = out.astype(o_ref.dtype)


def _round_up(n, m):
    return ((n + m - 1) // m) * m


def _pick_tile(b_pad, tb_max):
    """Largest lane-aligned tile dividing b_pad; prefer >=2 grid steps (v7x)."""
    tb = min(tb_max, b_pad)
    while b_pad % tb:
        tb -= LANE
    if tb == b_pad and b_pad >= 2 * LANE and (b_pad // 2) % LANE == 0:
        tb = b_pad // 2
    return tb


def local_activation_unit(user_behavior, queries, params, *, tb_max=1024):
    """user_behavior, queries: [B, EMB] float32 -> attention logits [B, 1].

    `params` holds PyTorch-layout tensors:
      (W1 [H1,4E], b1 [H1], alpha [H1], W2 [H2,H1], b2 [H2], W3 [1,H2], b3 [1],
       bn_running_mean [H1], bn_running_var [H1], bn_gamma [H1], bn_beta [H1])
    """
    B, E = queries.shape
    (W1, b1, alpha, W2, b2, W3, b3, bn_mean, bn_var, bn_gamma, bn_beta) = params

    # ---- layout plumbing (wrapper side, cheap) ----
    b_pad = max(_round_up(B, LANE), LANE)
    tb = _pick_tile(b_pad, tb_max)
    pad = b_pad - B

    # Single [2E, Bp] data slab: q in rows 0..E-1, u in rows E..2E-1.
    quT = jnp.concatenate(
        [queries.T.astype(jnp.float32), user_behavior.T.astype(jnp.float32)],
        axis=0)
    quT = jnp.pad(quT, ((0, 0), (0, pad)))                   # [2E, Bp]

    bn_scale_v = bn_gamma / jnp.sqrt(bn_var + BN_EPS)         # [H1]
    bn_shift_v = bn_beta - bn_mean * bn_scale_v               # [H1]

    def col(v, n):
        return jnp.asarray(v, jnp.float32).reshape(n, 1)

    wargs = (
        W1.astype(jnp.float32),                  # [H1, 4E]
        col(b1, H1),
        col(bn_scale_v, H1),
        col(bn_shift_v, H1),
        col(alpha, H1),
        W2.astype(jnp.float32),                  # [H2, H1]
        col(b2, H2),
        W3.reshape(H2, 1).astype(jnp.float32),   # [H2, 1] column
        col(b3, 1),
    )

    data_spec = pl.BlockSpec((2 * E, tb), lambda i: (0, i))

    def full(a):
        return pl.BlockSpec(a.shape, lambda i: (0, 0))

    flops = int(b_pad) * 2 * (4 * E * H1 + H1 * H2 + H2)
    bytes_accessed = int(4 * (2 * E * b_pad + b_pad)
                         + sum(4 * int(w.size) for w in wargs))

    out2d = pl.pallas_call(
        lau_kernel,
        out_shape=jax.ShapeDtypeStruct((1, b_pad), jnp.float32),
        grid=(b_pad // tb,),
        in_specs=[data_spec] + [full(a) for a in wargs],
        out_specs=pl.BlockSpec((1, tb), lambda i: (0, i)),
        compiler_params=pltpu.CompilerParams(dimension_semantics=("parallel",)),
        cost_estimate=pl.CostEstimate(flops=flops,
                                      transcendentals=int(b_pad) * H1,
                                      bytes_accessed=bytes_accessed),
    )(quT, *wargs)

    return out2d[0, :B][:, None]           # [B, 1]


def lau_reference(user_behavior, queries, params):
    (W1, b1, alpha, W2, b2, W3, b3, bn_mean, bn_var, bn_gamma, bn_beta) = params
    x = jnp.concatenate(
        [queries, user_behavior, queries - user_behavior, queries * user_behavior],
        axis=-1)
    h1 = x @ W1.T + b1
    bn = (h1 - bn_mean) / jnp.sqrt(bn_var + BN_EPS) * bn_gamma + bn_beta
    x_p = jax.nn.sigmoid(bn)
    d = alpha * (1.0 - x_p) * h1 + x_p * h1
    h2 = d @ W2.T + b2
    return h2 @ W3.T + b3


if __name__ == "__main__":
    key = jax.random.PRNGKey(0)
    k1, k2, k3, ka = jax.random.split(key, 4)

    # Deterministic parameter init (matches module __init__ shapes):
    #   Linear weights: xavier_normal, biases: zeros, Dice.alpha: uniform[0,1),
    #   BatchNorm1d fresh eval state: mean=0, var=1, gamma=1, beta=0, eps=1e-9.
    def xavier_normal(k, fan_out, fan_in):
        std = math.sqrt(2.0 / (fan_in + fan_out))
        return std * jax.random.normal(k, (fan_out, fan_in), jnp.float32)

    W1 = xavier_normal(k1, H1, 4 * EMB)            # [80, 16]
    W2 = xavier_normal(k2, H2, H1)                 # [40, 80]
    W3 = xavier_normal(k3, 1, H2)                  # [1, 40]
    alpha = jax.random.uniform(ka, (H1,), jnp.float32)

    params = (
        W1, jnp.zeros((H1,), jnp.float32), alpha,
        W2, jnp.zeros((H2,), jnp.float32),
        W3, jnp.zeros((1,), jnp.float32),
        jnp.zeros((H1,), jnp.float32),             # bn running_mean
        jnp.ones((H1,), jnp.float32),              # bn running_var
        jnp.ones((H1,), jnp.float32),              # bn gamma
        jnp.zeros((H1,), jnp.float32),             # bn beta
    )

    # B=2 is the tiny smoke shape; B=300 exercises lane padding (-> 384);
    # B=512 exercises a 2-step grid sharded across cores.
    for B in (2, 300, 512):
        kq_b, ku_b = jax.random.split(jax.random.fold_in(key, B))
        queries = jax.random.normal(kq_b, (B, EMB), jnp.float32)
        user_behavior = jax.random.normal(ku_b, (B, EMB), jnp.float32)

        out = jax.block_until_ready(
            local_activation_unit(user_behavior, queries, params, tb_max=1024))
        ref = lau_reference(user_behavior, queries, params)

        assert out.shape == (B, 1)
        assert jnp.allclose(out, ref, rtol=1e-4, atol=1e-4), "mismatch vs JAX reference"

    print("KERNEL_OK")
</pallas_src>

<mosaic_0001>
module attributes {stable_mosaic.version = 11 : i64} {
  func.func @lau_kernel(%arg0: i32, %arg1: memref<8x128xf32, #tpu.memory_space<vmem>>, %arg2: memref<80x16xf32, #tpu.memory_space<vmem>>, %arg3: memref<80x1xf32, #tpu.memory_space<vmem>>, %arg4: memref<80x1xf32, #tpu.memory_space<vmem>>, %arg5: memref<80x1xf32, #tpu.memory_space<vmem>>, %arg6: memref<80x1xf32, #tpu.memory_space<vmem>>, %arg7: memref<40x80xf32, #tpu.memory_space<vmem>>, %arg8: memref<40x1xf32, #tpu.memory_space<vmem>>, %arg9: memref<40x1xf32, #tpu.memory_space<vmem>>, %arg10: memref<1x1xf32, #tpu.memory_space<vmem>>, %arg11: memref<1x128xf32, #tpu.memory_space<vmem>>) attributes {dimension_semantics = [#tpu.dimension_semantics<parallel>], iteration_bounds = array<i64: 1>, scalar_prefetch = 0 : i64, scratch_operands = 0 : i64, tpu.core_type = #tpu.core_type<tc>, window_params = [{transform_indices = @transform_0, window_bounds = array<i64: 8, 128>}, {pipeline_mode = #tpu.pipeline_mode<synchronous>, transform_indices = @transform_1, window_bounds = array<i64: 80, 16>}, {pipeline_mode = #tpu.pipeline_mode<synchronous>, transform_indices = @transform_2, window_bounds = array<i64: 80, 1>}, {pipeline_mode = #tpu.pipeline_mode<synchronous>, transform_indices = @transform_3, window_bounds = array<i64: 80, 1>}, {pipeline_mode = #tpu.pipeline_mode<synchronous>, transform_indices = @transform_4, window_bounds = array<i64: 80, 1>}, {pipeline_mode = #tpu.pipeline_mode<synchronous>, transform_indices = @transform_5, window_bounds = array<i64: 80, 1>}, {pipeline_mode = #tpu.pipeline_mode<synchronous>, transform_indices = @transform_6, window_bounds = array<i64: 40, 80>}, {pipeline_mode = #tpu.pipeline_mode<synchronous>, transform_indices = @transform_7, window_bounds = array<i64: 40, 1>}, {pipeline_mode = #tpu.pipeline_mode<synchronous>, transform_indices = @transform_8, window_bounds = array<i64: 40, 1>}, {pipeline_mode = #tpu.pipeline_mode<synchronous>, transform_indices = @transform_9, window_bounds = array<i64: 1, 1>}, {transform_indices = @transform_10, window_bounds = array<i64: 1, 128>}]} {
    %c0 = arith.constant 0 : index
    %c0_0 = arith.constant 0 : index
    %0 = vector.load %arg1[%c0, %c0_0] : memref<8x128xf32, #tpu.memory_space<vmem>>, vector<8x128xf32>
    %1 = vector.extract_strided_slice %0 {offsets = [0, 0], sizes = [4, 128], strides = [1, 1]} : vector<8x128xf32> to vector<4x128xf32>
    %2 = vector.extract_strided_slice %0 {offsets = [4, 0], sizes = [4, 128], strides = [1, 1]} : vector<8x128xf32> to vector<4x128xf32>
    %3 = arith.subf %1, %2 : vector<4x128xf32>
    %4 = arith.mulf %1, %2 : vector<4x128xf32>
    %5 = tpu.concatenate %0, %3, %4 in 0 : vector<8x128xf32>, vector<4x128xf32>, vector<4x128xf32> -> vector<16x128xf32>
    %c0_1 = arith.constant 0 : index
    %c0_2 = arith.constant 0 : index
    %6 = vector.load %arg2[%c0_1, %c0_2] : memref<80x16xf32, #tpu.memory_space<vmem>>, vector<80x16xf32>
    %cst = arith.constant dense<0.000000e+00> : vector<80x128xf32>
    %7 = tpu.matmul %6, %5, %cst {dimension_numbers = #tpu.dot_dimension_numbers<[1], [0], [0], [1], [0, 0, 1, 1], [], []>} : vector<80x16xf32>, vector<16x128xf32>, vector<80x128xf32> -> vector<80x128xf32>
    %c0_3 = arith.constant 0 : index
    %c0_4 = arith.constant 0 : index
    %8 = vector.load %arg3[%c0_3, %c0_4] : memref<80x1xf32, #tpu.memory_space<vmem>>, vector<80x1xf32>
    %9 = vector.broadcast %8 : vector<80x1xf32> to vector<80x128xf32>
    %10 = arith.addf %7, %9 : vector<80x128xf32>
    %c0_5 = arith.constant 0 : index
    %c0_6 = arith.constant 0 : index
    %11 = vector.load %arg4[%c0_5, %c0_6] : memref<80x1xf32, #tpu.memory_space<vmem>>, vector<80x1xf32>
    %12 = vector.broadcast %11 : vector<80x1xf32> to vector<80x128xf32>
    %13 = arith.mulf %10, %12 : vector<80x128xf32>
    %c0_7 = arith.constant 0 : index
    %c0_8 = arith.constant 0 : index
    %14 = vector.load %arg5[%c0_7, %c0_8] : memref<80x1xf32, #tpu.memory_space<vmem>>, vector<80x1xf32>
    %15 = vector.broadcast %14 : vector<80x1xf32> to vector<80x128xf32>
    %16 = arith.addf %13, %15 : vector<80x128xf32>
    %17 = arith.negf %16 : vector<80x128xf32>
    %18 = math.exp %17 : vector<80x128xf32>
    %cst_9 = arith.constant 1.000000e+00 : f32
    %19 = vector.broadcast %cst_9 : f32 to vector<80x128xf32>
    %20 = arith.addf %19, %18 : vector<80x128xf32>
    %21 = arith.divf %19, %20 : vector<80x128xf32>
    %c0_10 = arith.constant 0 : index
    %c0_11 = arith.constant 0 : index
    %22 = vector.load %arg6[%c0_10, %c0_11] : memref<80x1xf32, #tpu.memory_space<vmem>>, vector<80x1xf32>
    %cst_12 = arith.constant 1.000000e+00 : f32
    %23 = vector.broadcast %cst_12 : f32 to vector<80x1xf32>
    %24 = arith.subf %23, %22 : vector<80x1xf32>
    %25 = vector.broadcast %24 : vector<80x1xf32> to vector<80x128xf32>
    %26 = arith.mulf %25, %21 : vector<80x128xf32>
    %27 = vector.broadcast %22 : vector<80x1xf32> to vector<80x128xf32>
    %28 = arith.addf %27, %26 : vector<80x128xf32>
    %29 = arith.mulf %10, %28 : vector<80x128xf32>
    %c0_13 = arith.constant 0 : index
    %c0_14 = arith.constant 0 : index
    %30 = vector.load %arg7[%c0_13, %c0_14] : memref<40x80xf32, #tpu.memory_space<vmem>>, vector<40x80xf32>
    %cst_15 = arith.constant dense<0.000000e+00> : vector<40x128xf32>
    %31 = tpu.matmul %30, %29, %cst_15 {dimension_numbers = #tpu.dot_dimension_numbers<[1], [0], [0], [1], [0, 0, 1, 1], [], []>} : vector<40x80xf32>, vector<80x128xf32>, vector<40x128xf32> -> vector<40x128xf32>
    %c0_16 = arith.constant 0 : index
    %c0_17 = arith.constant 0 : index
    %32 = vector.load %arg8[%c0_16, %c0_17] : memref<40x1xf32, #tpu.memory_space<vmem>>, vector<40x1xf32>
    %33 = vector.broadcast %32 : vector<40x1xf32> to vector<40x128xf32>
    %34 = arith.addf %31, %33 : vector<40x128xf32>
    %c0_18 = arith.constant 0 : index
    %c0_19 = arith.constant 0 : index
    %35 = vector.load %arg9[%c0_18, %c0_19] : memref<40x1xf32, #tpu.memory_space<vmem>>, vector<40x1xf32>
    %36 = vector.broadcast %35 : vector<40x1xf32> to vector<40x128xf32>
    %37 = arith.mulf %36, %34 : vector<40x128xf32>
    %cst_20 = arith.constant dense<0.000000e+00> : vector<128xf32>
    %38 = vector.multi_reduction <add>, %37, %cst_20 [0] : vector<40x128xf32> to vector<128xf32>
    %39 = vector.shape_cast %38 : vector<128xf32> to vector<1x128xf32>
    %c0_21 = arith.constant 0 : index
    %c0_22 = arith.constant 0 : index
    %40 = vector.load %arg10[%c0_21, %c0_22] : memref<1x1xf32, #tpu.memory_space<vmem>>, vector<1x1xf32>
    %41 = vector.broadcast %40 : vector<1x1xf32> to vector<1x128xf32>
    %42 = arith.addf %39, %41 : vector<1x128xf32>
    %c0_23 = arith.constant 0 : index
    %c0_24 = arith.constant 0 : index
    %43 = vector.load %arg11[%c0_23, %c0_24] : memref<1x128xf32, #tpu.memory_space<vmem>>, vector<1x128xf32>
    tpu.vector_store %arg11[%c0_23, %c0_24], %42 {strides = array<i32>} : memref<1x128xf32, #tpu.memory_space<vmem>>, vector<1x128xf32>,
    return
  }
  func.func @transform_0(%arg0: i32) -> (i32, i32) {
    %c0_i32 = arith.constant 0 : i32
    %c0_i32_0 = arith.constant 0 : i32
    return %c0_i32, %arg0 : i32, i32
  }
  func.func @transform_1(%arg0: i32) -> (i32, i32) {
    %c0_i32 = arith.constant 0 : i32
    %c0_i32_0 = arith.constant 0 : i32
    %c0_i32_1 = arith.constant 0 : i32
    return %c0_i32, %c0_i32_0 : i32, i32
  }
  func.func @transform_2(%arg0: i32) -> (i32, i32) {
    %c0_i32 = arith.constant 0 : i32
    %c0_i32_0 = arith.constant 0 : i32
    %c0_i32_1 = arith.constant 0 : i32
    return %c0_i32, %c0_i32_0 : i32, i32
  }
  func.func @transform_3(%arg0: i32) -> (i32, i32) {
    %c0_i32 = arith.constant 0 : i32
    %c0_i32_0 = arith.constant 0 : i32
    %c0_i32_1 = arith.constant 0 : i32
    return %c0_i32, %c0_i32_0 : i32, i32
  }
  func.func @transform_4(%arg0: i32) -> (i32, i32) {
    %c0_i32 = arith.constant 0 : i32
    %c0_i32_0 = arith.constant 0 : i32
    %c0_i32_1 = arith.constant 0 : i32
    return %c0_i32, %c0_i32_0 : i32, i32
  }
  func.func @transform_5(%arg0: i32) -> (i32, i32) {
    %c0_i32 = arith.constant 0 : i32
    %c0_i32_0 = arith.constant 0 : i32
    %c0_i32_1 = arith.constant 0 : i32
    return %c0_i32, %c0_i32_0 : i32, i32
  }
  func.func @transform_6(%arg0: i32) -> (i32, i32) {
    %c0_i32 = arith.constant 0 : i32
    %c0_i32_0 = arith.constant 0 : i32
    %c0_i32_1 = arith.constant 0 : i32
    return %c0_i32, %c0_i32_0 : i32, i32
  }
  func.func @transform_7(%arg0: i32) -> (i32, i32) {
    %c0_i32 = arith.constant 0 : i32
    %c0_i32_0 = arith.constant 0 : i32
    %c0_i32_1 = arith.constant 0 : i32
    return %c0_i32, %c0_i32_0 : i32, i32
  }
  func.func @transform_8(%arg0: i32) -> (i32, i32) {
    %c0_i32 = arith.constant 0 : i32
    %c0_i32_0 = arith.constant 0 : i32
    %c0_i32_1 = arith.constant 0 : i32
    return %c0_i32, %c0_i32_0 : i32, i32
  }
  func.func @transform_9(%arg0: i32) -> (i32, i32) {
    %c0_i32 = arith.constant 0 : i32
    %c0_i32_0 = arith.constant 0 : i32
    %c0_i32_1 = arith.constant 0 : i32
    return %c0_i32, %c0_i32_0 : i32, i32
  }
  func.func @transform_10(%arg0: i32) -> (i32, i32) {
    %c0_i32 = arith.constant 0 : i32
    %c0_i32_0 = arith.constant 0 : i32
    return %c0_i32, %arg0 : i32, i32
  }
}

</mosaic_0001>

<llo_original>
// kernel: tpu_custom_call.1
$region0: #{tpu_custom_call.1}
  #allocation0 [shape = 'u32[]', space=smem, size = 0x4, offset = 0x4, fixed_abs, tag = 'smem constant byte address 0x4 - core index']
  #allocation1 [shape = 'u32[144,128]{1,0:T(1,128)}', space=vmem, size = 0x12000, scoped, tag = 'internal scratch']
  #allocation2 [shape = 'f32[1,1]{1,0:T(1,128)S(1)}', space=vmem, size = 0x200, scoped, tag = 'scoped memory for tpu_custom_call.1']
  %s0 = inlined_call_operand.vmem [shape: f32[8,128], index: 0, kind: input, shape index: {}]
  %s1 = inlined_call_operand.vmem [shape: f32[80,16], index: 1, kind: input, shape index: {}]
  %s2 = inlined_call_operand.vmem [shape: f32[80,1], index: 2, kind: input, shape index: {}]
  %s3 = inlined_call_operand.vmem [shape: f32[80,1], index: 3, kind: input, shape index: {}]
  %s4 = inlined_call_operand.vmem [shape: f32[80,1], index: 4, kind: input, shape index: {}]
  %s5 = inlined_call_operand.vmem [shape: f32[80,1], index: 5, kind: input, shape index: {}]
  %s6 = inlined_call_operand.vmem [shape: f32[40,80], index: 6, kind: input, shape index: {}]
  %s7 = inlined_call_operand.vmem [shape: f32[40,1], index: 7, kind: input, shape index: {}]
  %s8 = inlined_call_operand.vmem [shape: f32[40,1], index: 8, kind: input, shape index: {}]
  %s9 = inlined_call_operand.<no memory space> [shape: f32[1,1], index: 9, kind: input, shape index: {}]
  %s10 = inlined_call_operand.hbm [shape: f32[1,128], index: 10, kind: output, shape index: {}]
  %s11 = sld [smem:[#allocation0]]
  $region50: #{tpu_custom_call.1} parent=0
    _
  %s13 = ssub.s32 1, %s11
  %s14 = scalar_select 0, %s13, %s11
  %v15 = vstv %s9
  %16 = vst [vmem:[#allocation2] sm:$0x1] %v15
  $region1: #{tpu_custom_call.1} parent=0
    #allocation3 [shape = 'u8[512]{0}', space=vmem, size = 0x400, scoped, tag = 'output window, operand 0, single buffered']
    #allocation4 [shape = 's32[1]{0}', space=sflag, size = 0x4, scoped, tag = 'scoped memory for tpu_custom_call.1']
    %17 = vsyncpa [#allocation4], 0
    // Predicated region
    $region2: #{tpu_custom_call.1} parent=1 // pred_check
      _
    $region3: #{tpu_custom_call.1} parent=1 // pred_check_branch
      %19 = sbr.rel (0) target = $region5
    $region4: #{tpu_custom_call.1} parent=1 // pred_region
      _
    $region5: #{tpu_custom_call.1} parent=1 // pred_fallthru
      _
    // Predicated region
    $region6: #{tpu_custom_call.1} parent=1 // pred_check
      _
    $region7: #{tpu_custom_call.1} parent=1 // pred_check_branch
      %21 = sbr.rel (0) target = $region9
    $region8: #{tpu_custom_call.1} parent=1 // pred_region
      _
    $region9: #{tpu_custom_call.1} parent=1 // pred_fallthru
      _
    // Predicated region
    $region10: #{tpu_custom_call.1} parent=1 // pred_check
      _
    $region11: #{tpu_custom_call.1} parent=1 // pred_check_branch
      %23 = sbr.rel (0) target = $region13
    $region12: #{tpu_custom_call.1} parent=1 // pred_region
      _
    $region13: #{tpu_custom_call.1} parent=1 // pred_fallthru
      _
    // Predicated region
    $region14: #{tpu_custom_call.1} parent=1 // pred_check
      _
    $region15: #{tpu_custom_call.1} parent=1 // pred_check_branch
      %25 = sbr.rel (0) target = $region17
    $region16: #{tpu_custom_call.1} parent=1 // pred_region
      _
    $region17: #{tpu_custom_call.1} parent=1 // pred_fallthru
      _
    // Predicated region
    $region18: #{tpu_custom_call.1} parent=1 // pred_check
      _
    $region19: #{tpu_custom_call.1} parent=1 // pred_check_branch
      %27 = sbr.rel (0) target = $region21
    $region20: #{tpu_custom_call.1} parent=1 // pred_region
      _
    $region21: #{tpu_custom_call.1} parent=1 // pred_fallthru
      _
    // Predicated region
    $region22: #{tpu_custom_call.1} parent=1 // pred_check
      _
    $region23: #{tpu_custom_call.1} parent=1 // pred_check_branch
      %29 = sbr.rel (0) target = $region25
    $region24: #{tpu_custom_call.1} parent=1 // pred_region
      _
    $region25: #{tpu_custom_call.1} parent=1 // pred_fallthru
      _
    // Predicated region
    $region26: #{tpu_custom_call.1} parent=1 // pred_check
      _
    $region27: #{tpu_custom_call.1} parent=1 // pred_check_branch
      %31 = sbr.rel (0) target = $region29
    $region28: #{tpu_custom_call.1} parent=1 // pred_region
      _
    $region29: #{tpu_custom_call.1} parent=1 // pred_fallthru
      _
    // Predicated region
    $region30: #{tpu_custom_call.1} parent=1 // pred_check
      _
    $region31: #{tpu_custom_call.1} parent=1 // pred_check_branch
      %33 = sbr.rel (0) target = $region33
    $region32: #{tpu_custom_call.1} parent=1 // pred_region
      _
    $region33: #{tpu_custom_call.1} parent=1 // pred_fallthru
      _
    // Predicated region
    $region34: #{tpu_custom_call.1} parent=1 // pred_check
      _
    $region35: #{tpu_custom_call.1} parent=1 // pred_check_branch
      %35 = sbr.rel (0) target = $region37
    $region36: #{tpu_custom_call.1} parent=1 // pred_region
      _
    $region37: #{tpu_custom_call.1} parent=1 // pred_fallthru
      _
    // Predicated region
    $region38: #{tpu_custom_call.1} parent=1 // pred_check
      _
    $region39: #{tpu_custom_call.1} parent=1 // pred_check_branch
      %37 = sbr.rel (0) target = $region41
    $region40: #{tpu_custom_call.1} parent=1 // pred_region
      _
    $region41: #{tpu_custom_call.1} parent=1 // pred_fallthru
      _
    %v38 = vld [vmem:[%s0] sm:$0xff]
    %v40 = vrot.slane %v38, 4
    %v42 = vsub.f32 %v38, %v40
    %v43 = vmul.f32 %v38, %v40
    %v45 = vrot.slane %v43, 4
    %vm47 = vcmask 1043456
    %v48 = vsel %vm47, %v42, %v45
    %v49 = vld [vmem:[%s1] sm:$0xff]
    %v50 = vld [vmem:[%s1 + $0x8] sm:$0xff]
    %v51 = vld [vmem:[%s1 + $0x10] sm:$0xff]
    %v52 = vld [vmem:[%s1 + $0x18] sm:$0xff]
    %v53 = vld [vmem:[%s1 + $0x20] sm:$0xff]
    %v54 = vld [vmem:[%s1 + $0x28] sm:$0xff]
    %v55 = vld [vmem:[%s1 + $0x30] sm:$0xff]
    %v56 = vld [vmem:[%s1 + $0x38] sm:$0xff]
    %v57 = vld [vmem:[%s1 + $0x40] sm:$0xff]
    %v58 = vld [vmem:[%s1 + $0x48] sm:$0xff]
    %v59 = vld [vmem:[%s2] sm:$0xff]
    %v60 = vld [vmem:[%s2 + $0x8] sm:$0xff]
    %v61 = vld [vmem:[%s2 + $0x10] sm:$0xff]
    %v62 = vld [vmem:[%s2 + $0x18] sm:$0xff]
    %v63 = vld [vmem:[%s2 + $0x20] sm:$0xff]
    %v64 = vld [vmem:[%s2 + $0x28] sm:$0xff]
    %v65 = vld [vmem:[%s2 + $0x30] sm:$0xff]
    %v66 = vld [vmem:[%s2 + $0x38] sm:$0xff]
    %v67 = vld [vmem:[%s2 + $0x40] sm:$0xff]
    %v68 = vld [vmem:[%s2 + $0x48] sm:$0xff]
    %70 = vset.pattern.permute.xlu0 0
    %71 = vperm.xlu0 %70, %v59
    %v72 = vpop.permute.xlu0 %71
    %75 = vset.pattern.permute.xlu0 0
    %76 = vperm.xlu0 %75, %v60
    %v77 = vpop.permute.xlu0 %76
    %80 = vset.pattern.permute.xlu0 0
    %81 = vperm.xlu0 %80, %v61
    %v82 = vpop.permute.xlu0 %81
    %85 = vset.pattern.permute.xlu0 0
    %86 = vperm.xlu0 %85, %v62
    %v87 = vpop.permute.xlu0 %86
    %90 = vset.pattern.permute.xlu0 0
    %91 = vperm.xlu0 %90, %v63
    %v92 = vpop.permute.xlu0 %91
    %95 = vset.pattern.permute.xlu0 0
    %96 = vperm.xlu0 %95, %v64
    %v97 = vpop.permute.xlu0 %96
    %100 = vset.pattern.permute.xlu0 0
    %101 = vperm.xlu0 %100, %v65
    %v102 = vpop.permute.xlu0 %101
    %105 = vset.pattern.permute.xlu0 0
    %106 = vperm.xlu0 %105, %v66
    %v107 = vpop.permute.xlu0 %106
    %110 = vset.pattern.permute.xlu0 0
    %111 = vperm.xlu0 %110, %v67
    %v112 = vpop.permute.xlu0 %111
    %115 = vset.pattern.permute.xlu0 0
    %116 = vperm.xlu0 %115, %v68
    %v117 = vpop.permute.xlu0 %116
    %vm119 = vcmask 130048
    %v121 = vsel %vm119, %v49, 0
    %v124 = vsel %vm119, %v50, 0
    %v127 = vsel %vm119, %v51, 0
    %v130 = vsel %vm119, %v52, 0
    %v133 = vsel %vm119, %v53, 0
    %v136 = vsel %vm119, %v54, 0
    %v139 = vsel %vm119, %v55, 0
    %v142 = vsel %vm119, %v56, 0
    %v145 = vsel %vm119, %v57, 0
    %v148 = vsel %vm119, %v58, 0
    %150 = vmatprep.subr.mxu0 0.0
    %151 = vmatpush1.msra.mxu0 0.0
    %152 = vmatprep.subr.mxu0 0.0
    %153 = vmatpush1.msra.mxu0 0.0
    %154 = vmatprep.subr.mxu0 0.0
    %155 = vmatpush1.msra.mxu0 0.0
    %156 = vmatprep.subr.mxu0 0.0
    %157 = vmatpush1.msra.mxu0 0.0
    %158 = vmatprep.subr.mxu0 0.0
    %159 = vmatpush1.msra.mxu0 0.0
    %160 = vmatprep.subr.mxu0 0.0
    %161 = vmatpush1.msra.mxu0 0.0
    %162 = vmatprep.subr.mxu0 0.0
    %163 = vmatpush1.msra.mxu0 0.0
    %164 = vmatprep.subr.mxu0 0.0
    %165 = vmatpush1.msra.mxu0 0.0
    %166 = vmatprep.subr.mxu0 0.0
    %167 = vmatpush1.msra.mxu0 0.0
    %168 = vmatprep.subr.mxu0 0.0
    %169 = vmatpush1.msra.mxu0 0.0
    %170 = vmatprep.subr.mxu0 0.0
    %171 = vmatpush1.msra.mxu0 0.0
    %172 = vmatprep.subr.mxu0 0.0
    %173 = vmatpush1.msra.mxu0 0.0
    %174 = vmatprep.subr.mxu0 0.0
    %175 = vmatpush1.msra.mxu0 0.0
    %176 = vmatprep.subr.mxu0 0.0
    %177 = vmatpush1.msra.mxu0 0.0
    %178 = vmatprep.subr.mxu0 0.0
    %179 = vmatpush1.msra.mxu0 %v48
    %180 = vmatprep.subr.mxu0 0.0
    %181 = vmatpush1.msra.mxu0 %v38
    %182 = vmatprep.subr.mxu0 0.0
    %183 = vmatpush2.msra.mxu0 0.0
    %184 = vmatprep.subr.mxu0 0.0
    %185 = vmatpush2.msra.mxu0 0.0
    %186 = vmatprep.subr.mxu0 0.0
    %187 = vmatpush2.msra.mxu0 0.0
    %188 = vmatprep.subr.mxu0 0.0
    %189 = vmatpush2.msra.mxu0 0.0
    %190 = vmatprep.subr.mxu0 0.0
    %191 = vmatpush2.msra.mxu0 0.0
    %192 = vmatprep.subr.mxu0 0.0
    %193 = vmatpush2.msra.mxu0 0.0
    %194 = vmatprep.subr.mxu0 0.0
    %195 = vmatpush2.msra.mxu0 0.0
    %196 = vmatprep.subr.mxu0 0.0
    %197 = vmatpush2.msra.mxu0 0.0
    %198 = vmatprep.subr.mxu0 0.0
    %199 = vmatpush2.msra.mxu0 0.0
    %200 = vmatprep.subr.mxu0 0.0
    %201 = vmatpush2.msra.mxu0 0.0
    %202 = vmatprep.subr.mxu0 0.0
    %203 = vmatpush2.msra.mxu0 0.0
    %204 = vmatprep.subr.mxu0 0.0
    %205 = vmatpush2.msra.mxu0 0.0
    %206 = vmatprep.subr.mxu0 0.0
    %207 = vmatpush2.msra.mxu0 0.0
    %208 = vmatprep.subr.mxu0 0.0
    %209 = vmatpush2.msra.mxu0 0.0
    %210 = vmatprep.subr.mxu0 0.0
    %211 = vmatpush2.msra.mxu0 0.0
    %212 = vmatprep.subr.mxu0 0.0
    %213 = vmatpush2.msra.mxu0 0.0
    %214 = vmatprep.mubr.f32.mxu0 0.0
    %215 = vmatmul.mubr.f32.gmra.mxu0 %v121
    %v216 = vpop.f32.mrf.mxu0
    %v217 = vadd.f32 %v72, %v216
    %v218 = vpop.f32.mrf.mxu0
    %219 = vmatprep.mubr.f32.mxu0 0.0
    %220 = vmatmul.mubr.f32.gmra.mxu0 %v124
    %v221 = vpop.f32.mrf.mxu0
    %v222 = vadd.f32 %v77, %v221
    %v223 = vpop.f32.mrf.mxu0
    %224 = vmatprep.mubr.f32.mxu0 0.0
    %225 = vmatmul.mubr.f32.gmra.mxu0 %v127
    %v226 = vpop.f32.mrf.mxu0
    %v227 = vadd.f32 %v82, %v226
    %v228 = vpop.f32.mrf.mxu0
    %229 = vmatprep.mubr.f32.mxu0 0.0
    %230 = vmatmul.mubr.f32.gmra.mxu0 %v130
    %v231 = vpop.f32.mrf.mxu0
    %v232 = vadd.f32 %v87, %v231
    %v233 = vpop.f32.mrf.mxu0
    %234 = vmatprep.mubr.f32.mxu0 0.0
    %235 = vmatmul.mubr.f32.gmra.mxu0 %v133
    %v236 = vpop.f32.mrf.mxu0
    %v237 = vadd.f32 %v92, %v236
    %v238 = vpop.f32.mrf.mxu0
    %239 = vmatprep.mubr.f32.mxu0 0.0
    %240 = vmatmul.mubr.f32.gmra.mxu0 %v136
    %v241 = vpop.f32.mrf.mxu0
    %v242 = vadd.f32 %v97, %v241
    %v243 = vpop.f32.mrf.mxu0
    %244 = vmatprep.mubr.f32.mxu0 0.0
    %245 = vmatmul.mubr.f32.gmra.mxu0 %v139
    %v246 = vpop.f32.mrf.mxu0
    %v247 = vadd.f32 %v102, %v246
    %v248 = vpop.f32.mrf.mxu0
    %249 = vmatprep.mubr.f32.mxu0 0.0
    %250 = vmatmul.mubr.f32.gmra.mxu0 %v142
    %v251 = vpop.f32.mrf.mxu0
    %v252 = vadd.f32 %v107, %v251
    %v253 = vpop.f32.mrf.mxu0
    %254 = vmatprep.mubr.f32.mxu0 0.0
    %255 = vmatmul.mubr.f32.gmra.mxu0 %v145
    %v256 = vpop.f32.mrf.mxu0
    %v257 = vadd.f32 %v112, %v256
    %v258 = vpop.f32.mrf.mxu0
    %259 = vmatprep.mubr.f32.mxu0 0.0
    %260 = vmatmul.mubr.f32.gmra.mxu0 %v148
    %v261 = vpop.f32.mrf.mxu0
    %v262 = vadd.f32 %v117, %v261
    %v263 = vpop.f32.mrf.mxu0
    %264 = vdwg.mxu0
    %v265 = vld [vmem:[%s3] sm:$0xff]
    %v266 = vld [vmem:[%s3 + $0x8] sm:$0xff]
    %v267 = vld [vmem:[%s3 + $0x10] sm:$0xff]
    %v268 = vld [vmem:[%s3 + $0x18] sm:$0xff]
    %v269 = vld [vmem:[%s3 + $0x20] sm:$0xff]
    %v270 = vld [vmem:[%s3 + $0x28] sm:$0xff]
    %v271 = vld [vmem:[%s3 + $0x30] sm:$0xff]
    %v272 = vld [vmem:[%s3 + $0x38] sm:$0xff]
    %v273 = vld [vmem:[%s3 + $0x40] sm:$0xff]
    %v274 = vld [vmem:[%s3 + $0x48] sm:$0xff]
    %276 = vset.pattern.permute.xlu0 0
    %277 = vperm.xlu0 %276, %v265
    %v278 = vpop.permute.xlu0 %277
    %281 = vset.pattern.permute.xlu0 0
    %282 = vperm.xlu0 %281, %v266
    %v283 = vpop.permute.xlu0 %282
    %286 = vset.pattern.permute.xlu0 0
    %287 = vperm.xlu0 %286, %v267
    %v288 = vpop.permute.xlu0 %287
    %291 = vset.pattern.permute.xlu0 0
    %292 = vperm.xlu0 %291, %v268
    %v293 = vpop.permute.xlu0 %292
    %296 = vset.pattern.permute.xlu0 0
    %297 = vperm.xlu0 %296, %v269
    %v298 = vpop.permute.xlu0 %297
    %301 = vset.pattern.permute.xlu0 0
    %302 = vperm.xlu0 %301, %v270
    %v303 = vpop.permute.xlu0 %302
    %306 = vset.pattern.permute.xlu0 0
    %307 = vperm.xlu0 %306, %v271
    %v308 = vpop.permute.xlu0 %307
    %311 = vset.pattern.permute.xlu0 0
    %312 = vperm.xlu0 %311, %v272
    %v313 = vpop.permute.xlu0 %312
    %316 = vset.pattern.permute.xlu0 0
    %317 = vperm.xlu0 %316, %v273
    %v318 = vpop.permute.xlu0 %317
    %321 = vset.pattern.permute.xlu0 0
    %322 = vperm.xlu0 %321, %v274
    %v323 = vpop.permute.xlu0 %322
    %v325 = vmul.f32 %v217, %v278
    %v326 = vmul.f32 %v222, %v283
    %v327 = vmul.f32 %v227, %v288
    %v328 = vmul.f32 %v232, %v293
    %v329 = vmul.f32 %v237, %v298
    %v330 = vmul.f32 %v242, %v303
    %v331 = vmul.f32 %v247, %v308
    %v332 = vmul.f32 %v252, %v313
    %v333 = vmul.f32 %v257, %v318
    %v334 = vmul.f32 %v262, %v323
    %v335 = vld [vmem:[%s4] sm:$0xff]
    %v336 = vld [vmem:[%s4 + $0x8] sm:$0xff]
    %v337 = vld [vmem:[%s4 + $0x10] sm:$0xff]
    %v338 = vld [vmem:[%s4 + $0x18] sm:$0xff]
    %v339 = vld [vmem:[%s4 + $0x20] sm:$0xff]
    %v340 = vld [vmem:[%s4 + $0x28] sm:$0xff]
    %v341 = vld [vmem:[%s4 + $0x30] sm:$0xff]
    %v342 = vld [vmem:[%s4 + $0x38] sm:$0xff]
    %v343 = vld [vmem:[%s4 + $0x40] sm:$0xff]
    %v344 = vld [vmem:[%s4 + $0x48] sm:$0xff]
    %346 = vset.pattern.permute.xlu0 0
    %347 = vperm.xlu0 %346, %v335
    %v348 = vpop.permute.xlu0 %347
    %351 = vset.pattern.permute.xlu0 0
    %352 = vperm.xlu0 %351, %v336
    %v353 = vpop.permute.xlu0 %352
    %356 = vset.pattern.permute.xlu0 0
    %357 = vperm.xlu0 %356, %v337
    %v358 = vpop.permute.xlu0 %357
    %361 = vset.pattern.permute.xlu0 0
    %362 = vperm.xlu0 %361, %v338
    %v363 = vpop.permute.xlu0 %362
    %366 = vset.pattern.permute.xlu0 0
    %367 = vperm.xlu0 %366, %v339
    %v368 = vpop.permute.xlu0 %367
    %371 = vset.pattern.permute.xlu0 0
    %372 = vperm.xlu0 %371, %v340
    %v373 = vpop.permute.xlu0 %372
    %376 = vset.pattern.permute.xlu0 0
    %377 = vperm.xlu0 %376, %v341
    %v378 = vpop.permute.xlu0 %377
    %381 = vset.pattern.permute.xlu0 0
    %382 = vperm.xlu0 %381, %v342
    %v383 = vpop.permute.xlu0 %382
    %386 = vset.pattern.permute.xlu0 0
    %387 = vperm.xlu0 %386, %v343
    %v388 = vpop.permute.xlu0 %387
    %391 = vset.pattern.permute.xlu0 0
    %392 = vperm.xlu0 %391, %v344
    %v393 = vpop.permute.xlu0 %392
    %v395 = vadd.f32 %v325, %v348
    %v396 = vadd.f32 %v326, %v353
    %v397 = vadd.f32 %v327, %v358
    %v398 = vadd.f32 %v328, %v363
    %v399 = vadd.f32 %v329, %v368
    %v400 = vadd.f32 %v330, %v373
    %v401 = vadd.f32 %v331, %v378
    %v402 = vadd.f32 %v332, %v383
    %v403 = vadd.f32 %v333, %v388
    %v404 = vadd.f32 %v334, %v393
    %v405 = vxor.u32 %v395, 2147483648
    %v406 = vxor.u32 %v396, 2147483648
    %v407 = vxor.u32 %v397, 2147483648
    %v408 = vxor.u32 %v398, 2147483648
    %v409 = vxor.u32 %v399, 2147483648
    %v410 = vxor.u32 %v400, 2147483648
    %v411 = vxor.u32 %v401, 2147483648
    %v412 = vxor.u32 %v402, 2147483648
    %v413 = vxor.u32 %v403, 2147483648
    %v414 = vxor.u32 %v404, 2147483648
    %v415 = vmul.f32 %v405, 1.442695
    %v416 = vpow.pop %v415
    %v417 = vmul.f32 %v406, 1.442695
    %v418 = vpow.pop %v417
    %v419 = vmul.f32 %v407, 1.442695
    %v420 = vpow.pop %v419
    %v421 = vmul.f32 %v408, 1.442695
    %v422 = vpow.pop %v421
    %v423 = vmul.f32 %v409, 1.442695
    %v424 = vpow.pop %v423
    %v425 = vmul.f32 %v410, 1.442695
    %v426 = vpow.pop %v425
    %v427 = vmul.f32 %v411, 1.442695
    %v428 = vpow.pop %v427
    %v429 = vmul.f32 %v412, 1.442695
    %v430 = vpow.pop %v429
    %v431 = vmul.f32 %v413, 1.442695
    %v432 = vpow.pop %v431
    %v433 = vmul.f32 %v414, 1.442695
    %v434 = vpow.pop %v433
    %v435 = vadd.f32 %v416, 1.0
    %v436 = vadd.f32 %v418, 1.0
    %v437 = vadd.f32 %v420, 1.0
    %v438 = vadd.f32 %v422, 1.0
    %v439 = vadd.f32 %v424, 1.0
    %v440 = vadd.f32 %v426, 1.0
    %v441 = vadd.f32 %v428, 1.0
    %v442 = vadd.f32 %v430, 1.0
    %v443 = vadd.f32 %v432, 1.0
    %v444 = vadd.f32 %v434, 1.0
    %v445 = vrcp.pop %v435
    %v446 = vmul.f32 1.0, %v445
    %v447 = vrcp.pop %v436
    %v448 = vmul.f32 1.0, %v447
    %v449 = vrcp.pop %v437
    %v450 = vmul.f32 1.0, %v449
    %v451 = vrcp.pop %v438
    %v452 = vmul.f32 1.0, %v451
    %v453 = vrcp.pop %v439
    %v454 = vmul.f32 1.0, %v453
    %v455 = vrcp.pop %v440
    %v456 = vmul.f32 1.0, %v455
    %v457 = vrcp.pop %v441
    %v458 = vmul.f32 1.0, %v457
    %v459 = vrcp.pop %v442
    %v460 = vmul.f32 1.0, %v459
    %v461 = vrcp.pop %v443
    %v462 = vmul.f32 1.0, %v461
    %v463 = vrcp.pop %v444
    %v464 = vmul.f32 1.0, %v463
    %v465 = vld [vmem:[%s5] sm:$0xff]
    %v466 = vld [vmem:[%s5 + $0x8] sm:$0xff]
    %v467 = vld [vmem:[%s5 + $0x10] sm:$0xff]
    %v468 = vld [vmem:[%s5 + $0x18] sm:$0xff]
    %v469 = vld [vmem:[%s5 + $0x20] sm:$0xff]
    %v470 = vld [vmem:[%s5 + $0x28] sm:$0xff]
    %v471 = vld [vmem:[%s5 + $0x30] sm:$0xff]
    %v472 = vld [vmem:[%s5 + $0x38] sm:$0xff]
    %v473 = vld [vmem:[%s5 + $0x40] sm:$0xff]
    %v474 = vld [vmem:[%s5 + $0x48] sm:$0xff]
    %v475 = vsub.f32 1.0, %v465
    %v476 = vsub.f32 1.0, %v466
    %v477 = vsub.f32 1.0, %v467
    %v478 = vsub.f32 1.0, %v468
    %v479 = vsub.f32 1.0, %v469
    %v480 = vsub.f32 1.0, %v470
    %v481 = vsub.f32 1.0, %v471
    %v482 = vsub.f32 1.0, %v472
    %v483 = vsub.f32 1.0, %v473
    %v484 = vsub.f32 1.0, %v474
    %486 = vset.pattern.permute.xlu0 0
    %487 = vperm.xlu0 %486, %v475
    %v488 = vpop.permute.xlu0 %487
    %491 = vset.pattern.permute.xlu0 0
    %492 = vperm.xlu0 %491, %v476
    %v493 = vpop.permute.xlu0 %492
    %496 = vset.pattern.permute.xlu0 0
    %497 = vperm.xlu0 %496, %v477
    %v498 = vpop.permute.xlu0 %497
    %501 = vset.pattern.permute.xlu0 0
    %502 = vperm.xlu0 %501, %v478
    %v503 = vpop.permute.xlu0 %502
    %506 = vset.pattern.permute.xlu0 0
    %507 = vperm.xlu0 %506, %v479
    %v508 = vpop.permute.xlu0 %507
    %511 = vset.pattern.permute.xlu0 0
    %512 = vperm.xlu0 %511, %v480
    %v513 = vpop.permute.xlu0 %512
    %516 = vset.pattern.permute.xlu0 0
    %517 = vperm.xlu0 %516, %v481
    %v518 = vpop.permute.xlu0 %517
    %521 = vset.pattern.permute.xlu0 0
    %522 = vperm.xlu0 %521, %v482
    %v523 = vpop.permute.xlu0 %522
    %526 = vset.pattern.permute.xlu0 0
    %527 = vperm.xlu0 %526, %v483
    %v528 = vpop.permute.xlu0 %527
    %531 = vset.pattern.permute.xlu0 0
    %532 = vperm.xlu0 %531, %v484
    %v533 = vpop.permute.xlu0 %532
    %v535 = vmul.f32 %v488, %v446
    %v536 = vmul.f32 %v493, %v448
    %v537 = vmul.f32 %v498, %v450
    %v538 = vmul.f32 %v503, %v452
    %v539 = vmul.f32 %v508, %v454
    %v540 = vmul.f32 %v513, %v456
    %v541 = vmul.f32 %v518, %v458
    %v542 = vmul.f32 %v523, %v460
    %v543 = vmul.f32 %v528, %v462
    %v544 = vmul.f32 %v533, %v464
    %546 = vset.pattern.permute.xlu0 0
    %547 = vperm.xlu0 %546, %v465
    %v548 = vpop.permute.xlu0 %547
    %551 = vset.pattern.permute.xlu0 0
    %552 = vperm.xlu0 %551, %v466
    %v553 = vpop.permute.xlu0 %552
    %556 = vset.pattern.permute.xlu0 0
    %557 = vperm.xlu0 %556, %v467
    %v558 = vpop.permute.xlu0 %557
    %561 = vset.pattern.permute.xlu0 0
    %562 = vperm.xlu0 %561, %v468
    %v563 = vpop.permute.xlu0 %562
    %566 = vset.pattern.permute.xlu0 0
    %567 = vperm.xlu0 %566, %v469
    %v568 = vpop.permute.xlu0 %567
    %571 = vset.pattern.permute.xlu0 0
    %572 = vperm.xlu0 %571, %v470
    %v573 = vpop.permute.xlu0 %572
    %576 = vset.pattern.permute.xlu0 0
    %577 = vperm.xlu0 %576, %v471
    %v578 = vpop.permute.xlu0 %577
    %581 = vset.pattern.permute.xlu0 0
    %582 = vperm.xlu0 %581, %v472
    %v583 = vpop.permute.xlu0 %582
    %586 = vset.pattern.permute.xlu0 0
    %587 = vperm.xlu0 %586, %v473
    %v588 = vpop.permute.xlu0 %587
    %591 = vset.pattern.permute.xlu0 0
    %592 = vperm.xlu0 %591, %v474
    %v593 = vpop.permute.xlu0 %592
    %v595 = vadd.f32 %v548, %v535
    %v596 = vadd.f32 %v553, %v536
    %v597 = vadd.f32 %v558, %v537
    %v598 = vadd.f32 %v563, %v538
    %v599 = vadd.f32 %v568, %v539
    %v600 = vadd.f32 %v573, %v540
    %v601 = vadd.f32 %v578, %v541
    %v602 = vadd.f32 %v583, %v542
    %v603 = vadd.f32 %v588, %v543
    %v604 = vadd.f32 %v593, %v544
    %v605 = vmul.f32 %v217, %v595
    %v606 = vmul.f32 %v222, %v596
    %v607 = vmul.f32 %v227, %v597
    %v608 = vmul.f32 %v232, %v598
    %v609 = vmul.f32 %v237, %v599
    %v610 = vmul.f32 %v242, %v600
    %v611 = vmul.f32 %v247, %v601
    %v612 = vmul.f32 %v252, %v602
    %v613 = vmul.f32 %v257, %v603
    %v614 = vmul.f32 %v262, %v604
    %v615 = vld [vmem:[%s6] sm:$0xff]
    %v616 = vld [vmem:[%s6 + $0x8] sm:$0xff]
    %v617 = vld [vmem:[%s6 + $0x10] sm:$0xff]
    %v618 = vld [vmem:[%s6 + $0x18] sm:$0xff]
    %v619 = vld [vmem:[%s6 + $0x20] sm:$0xff]
    %v620 = vld [vmem:[%s7] sm:$0xff]
    %v621 = vld [vmem:[%s7 + $0x8] sm:$0xff]
    %v622 = vld [vmem:[%s7 + $0x10] sm:$0xff]
    %v623 = vld [vmem:[%s7 + $0x18] sm:$0xff]
    %v624 = vld [vmem:[%s7 + $0x20] sm:$0xff]
    %626 = vset.pattern.permute.xlu0 0
    %627 = vperm.xlu0 %626, %v620
    %v628 = vpop.permute.xlu0 %627
    %631 = vset.pattern.permute.xlu0 0
    %632 = vperm.xlu0 %631, %v621
    %v633 = vpop.permute.xlu0 %632
    %636 = vset.pattern.permute.xlu0 0
    %637 = vperm.xlu0 %636, %v622
    %v638 = vpop.permute.xlu0 %637
    %641 = vset.pattern.permute.xlu0 0
    %642 = vperm.xlu0 %641, %v623
    %v643 = vpop.permute.xlu0 %642
    %646 = vset.pattern.permute.xlu0 0
    %647 = vperm.xlu0 %646, %v624
    %v648 = vpop.permute.xlu0 %647
    %vm650 = vcmask 654336
    %v652 = vsel %vm650, %v615, 0
    %v655 = vsel %vm650, %v616, 0
    %v658 = vsel %vm650, %v617, 0
    %v661 = vsel %vm650, %v618, 0
    %v664 = vsel %vm650, %v619, 0
    %666 = vmatprep.subr.mxu0 0.0
    %667 = vmatpush1.msra.mxu0 0.0
    %668 = vmatprep.subr.mxu0 0.0
    %669 = vmatpush1.msra.mxu0 0.0
    %670 = vmatprep.subr.mxu0 0.0
    %671 = vmatpush1.msra.mxu0 0.0
    %672 = vmatprep.subr.mxu0 0.0
    %673 = vmatpush1.msra.mxu0 0.0
    %674 = vmatprep.subr.mxu0 0.0
    %675 = vmatpush1.msra.mxu0 0.0
    %676 = vmatprep.subr.mxu0 0.0
    %677 = vmatpush1.msra.mxu0 0.0
    %678 = vmatprep.subr.mxu0 0.0
    %679 = vmatpush1.msra.mxu0 %v614
    %680 = vmatprep.subr.mxu0 0.0
    %681 = vmatpush1.msra.mxu0 %v613
    %682 = vmatprep.subr.mxu0 0.0
    %683 = vmatpush1.msra.mxu0 %v612
    %684 = vmatprep.subr.mxu0 0.0
    %685 = vmatpush1.msra.mxu0 %v611
    %686 = vmatprep.subr.mxu0 0.0
    %687 = vmatpush1.msra.mxu0 %v610
    %688 = vmatprep.subr.mxu0 0.0
    %689 = vmatpush1.msra.mxu0 %v609
    %690 = vmatprep.subr.mxu0 0.0
    %691 = vmatpush1.msra.mxu0 %v608
    %692 = vmatprep.subr.mxu0 0.0
    %693 = vmatpush1.msra.mxu0 %v607
    %694 = vmatprep.subr.mxu0 0.0
    %695 = vmatpush1.msra.mxu0 %v606
    %696 = vmatprep.subr.mxu0 0.0
    %697 = vmatpush1.msra.mxu0 %v605
    %698 = vmatprep.subr.mxu0 0.0
    %699 = vmatpush2.msra.mxu0 0.0
    %700 = vmatprep.subr.mxu0 0.0
    %701 = vmatpush2.msra.mxu0 0.0
    %702 = vmatprep.subr.mxu0 0.0
    %703 = vmatpush2.msra.mxu0 0.0
    %704 = vmatprep.subr.mxu0 0.0
    %705 = vmatpush2.msra.mxu0 0.0
    %706 = vmatprep.subr.mxu0 0.0
    %707 = vmatpush2.msra.mxu0 0.0
    %708 = vmatprep.subr.mxu0 0.0
    %709 = vmatpush2.msra.mxu0 0.0
    %710 = vmatprep.subr.mxu0 0.0
    %711 = vmatpush2.msra.mxu0 0.0
    %712 = vmatprep.subr.mxu0 0.0
    %713 = vmatpush2.msra.mxu0 0.0
    %714 = vmatprep.subr.mxu0 0.0
    %715 = vmatpush2.msra.mxu0 0.0
    %716 = vmatprep.subr.mxu0 0.0
    %717 = vmatpush2.msra.mxu0 0.0
    %718 = vmatprep.subr.mxu0 0.0
    %719 = vmatpush2.msra.mxu0 0.0
    %720 = vmatprep.subr.mxu0 0.0
    %721 = vmatpush2.msra.mxu0 0.0
    %722 = vmatprep.subr.mxu0 0.0
    %723 = vmatpush2.msra.mxu0 0.0
    %724 = vmatprep.subr.mxu0 0.0
    %725 = vmatpush2.msra.mxu0 0.0
    %726 = vmatprep.subr.mxu0 0.0
    %727 = vmatpush2.msra.mxu0 0.0
    %728 = vmatprep.subr.mxu0 0.0
    %729 = vmatpush2.msra.mxu0 0.0
    %730 = vmatprep.mubr.f32.mxu0 0.0
    %731 = vmatmul.mubr.f32.gmra.mxu0 %v652
    %v732 = vpop.f32.mrf.mxu0
    %v733 = vadd.f32 %v628, %v732
    %v734 = vpop.f32.mrf.mxu0
    %735 = vmatprep.mubr.f32.mxu0 0.0
    %736 = vmatmul.mubr.f32.gmra.mxu0 %v655
    %v737 = vpop.f32.mrf.mxu0
    %v738 = vadd.f32 %v633, %v737
    %v739 = vpop.f32.mrf.mxu0
    %740 = vmatprep.mubr.f32.mxu0 0.0
    %741 = vmatmul.mubr.f32.gmra.mxu0 %v658
    %v742 = vpop.f32.mrf.mxu0
    %v743 = vadd.f32 %v638, %v742
    %v744 = vpop.f32.mrf.mxu0
    %745 = vmatprep.mubr.f32.mxu0 0.0
    %746 = vmatmul.mubr.f32.gmra.mxu0 %v661
    %v747 = vpop.f32.mrf.mxu0
    %v748 = vadd.f32 %v643, %v747
    %v749 = vpop.f32.mrf.mxu0
    %750 = vmatprep.mubr.f32.mxu0 0.0
    %751 = vmatmul.mubr.f32.gmra.mxu0 %v664
    %v752 = vpop.f32.mrf.mxu0
    %v753 = vadd.f32 %v648, %v752
    %v754 = vpop.f32.mrf.mxu0
    %755 = vdwg.mxu0
    %v756 = vld [vmem:[%s8] sm:$0xff]
    %v757 = vld [vmem:[%s8 + $0x8] sm:$0xff]
    %v758 = vld [vmem:[%s8 + $0x10] sm:$0xff]
    %v759 = vld [vmem:[%s8 + $0x18] sm:$0xff]
    %v760 = vld [vmem:[%s8 + $0x20] sm:$0xff]
    %762 = vset.pattern.permute.xlu0 0
    %763 = vperm.xlu0 %762, %v756
    %v764 = vpop.permute.xlu0 %763
    %767 = vset.pattern.permute.xlu0 0
    %768 = vperm.xlu0 %767, %v757
    %v769 = vpop.permute.xlu0 %768
    %772 = vset.pattern.permute.xlu0 0
    %773 = vperm.xlu0 %772, %v758
    %v774 = vpop.permute.xlu0 %773
    %777 = vset.pattern.permute.xlu0 0
    %778 = vperm.xlu0 %777, %v759
    %v779 = vpop.permute.xlu0 %778
    %782 = vset.pattern.permute.xlu0 0
    %783 = vperm.xlu0 %782, %v760
    %v784 = vpop.permute.xlu0 %783
    %v786 = vmul.f32 %v764, %v733
    %v787 = vmul.f32 %v769, %v738
    %v788 = vmul.f32 %v774, %v743
    %v789 = vmul.f32 %v779, %v748
    %v790 = vmul.f32 %v784, %v753
    %v791 = vadd.f32 %v786, %v787
    %v792 = vadd.f32 %v791, %v788
    %v793 = vadd.f32 %v792, %v789
    %v794 = vadd.f32 %v793, %v790
    %v795 = vrot.slane %v794, 4
    %v796 = vadd.f32 %v794, %v795
    %v797 = vrot.slane %v796, 2
    %v798 = vadd.f32 %v796, %v797
    %v799 = vrot.slane %v798, 1
    %v800 = vadd.f32 %v798, %v799
    %v801 = vld [vmem:[#allocation2] sm:$0x1]
    %803 = vset.pattern.permute.xlu0 0
    %804 = vperm.xlu0 %803, %v801
    %v805 = vpop.permute.xlu0 %804
    %v807 = vlaneseq
    %v808 = vshrl.u32 %v807, 7
    %v809 = vsub.s32 0, %v808
    %v810 = vrot.slane %v805, %v809
    %v811 = vadd.f32 %v800, %v810
    %812 = vst [vmem:[#allocation3] sm:$0x1] %v811
    // Predicated region
    $region42: #{tpu_custom_call.1} parent=1 // pred_check
      _
    $region43: #{tpu_custom_call.1} parent=1 // pred_check_branch
      %814 = sbr.rel (0) target = $region45
    $region44: #{tpu_custom_call.1} parent=1 // pred_region
      %s816 = ssub.s32 16, 16
      %817 = vsyncadd [#allocation4], %s816
      %s819 = sshll.u32 [#allocation3], 4
      %s820 = int_to_ptr.vmem [resolvable:$true] %s819
      %822 = dma.vmem_to_hbm [thread:$0]  %s820, 16, %s10, [#allocation4]
    $region45: #{tpu_custom_call.1} parent=1 // pred_fallthru
      _
    // Predicated region
    $region46: #{tpu_custom_call.1} parent=1 // pred_check
      _
    $region47: #{tpu_custom_call.1} parent=1 // pred_check_branch
      %824 = sbr.rel (0) target = $region49
    $region48: #{tpu_custom_call.1} parent=1 // pred_region
      %825 = dma.done [#allocation4], 16
    $region49: #{tpu_custom_call.1} parent=1 // pred_fallthru
      _
    %826 = vsyncpa [#allocation4], 1

</llo_original>
